<compile_context>
chip_gen: v5e
topology: v5e:2x2
jax: 0.10.0
libtpu: 0.0.40
codegen_flags: <defaults>
</compile_context>

<pallas_src>
from functools import partial

import jax
import jax.numpy as jnp
from jax import lax
from jax.experimental import pallas as pl
from jax.experimental.pallas import tpu as pltpu


def _actor_kernel(x_ref, w1_ref, b1_ref, w2_ref, b2_ref, w3_ref, b3_ref,
                  ma_ref, o_ref):
    # x_ref: (tb, state_dim) natural layout.
    # w*_ref: PyTorch-native (out_features, in_features); b*_ref: (out, 1).
    # ma_ref: (1,) f32 scalar in SMEM.
    # Activations are kept feature-major (features, tb): batch on lanes.
    x = x_ref[...]

    # Layer 1: W1 (h1, sd) contracted against x (tb, sd) -> (h1, tb).
    # (rhs-transposed contraction, fused in-kernel: no pre-transposed state.)
    h = lax.dot_general(
        w1_ref[...], x.astype(w1_ref.dtype),
        dimension_numbers=(((1,), (1,)), ((), ())),
        preferred_element_type=jnp.float32)
    h = jnp.maximum(h + b1_ref[...], 0.0)

    # Layer 2: (h2, h1) @ (h1, tb) -> (h2, tb).
    h = jnp.dot(w2_ref[...], h.astype(w2_ref.dtype),
                preferred_element_type=jnp.float32)
    h = jnp.maximum(h + b2_ref[...], 0.0)

    # Layer 3: (ad, h2) @ (h2, tb) -> (ad, tb), tanh, scale by max_action.
    h = jnp.dot(w3_ref[...], h.astype(w3_ref.dtype),
                preferred_element_type=jnp.float32)
    out_fm = jnp.tanh(h + b3_ref[...]) * ma_ref[0]

    # One small XLU transpose of the (ad, tb) result, then store the natural
    # (tb, ad) block (kills the old wrapper-side output transpose).
    o_ref[...] = out_fm.T.astype(o_ref.dtype)


def _round_up(x, m):
    return ((x + m - 1) // m) * m


def _actor_forward_impl(state, params, max_action, batch_tile, stream_dtype):
    W1, b1 = params["W1"], params["b1"]
    W2, b2 = params["W2"], params["b2"]
    W3, b3 = params["W3"], params["b3"]

    B, state_dim = state.shape
    h1 = W1.shape[0]
    h2 = W2.shape[0]
    action_dim = W3.shape[0]

    x = state
    if stream_dtype is not None:
        # bf16 MXU inputs, f32 accumulation; biases / elementwise stay f32.
        x = x.astype(stream_dtype)
        W1 = W1.astype(stream_dtype)
        W2 = W2.astype(stream_dtype)
        W3 = W3.astype(stream_dtype)

    # Batch tiling:
    #  * B >= 256: split into >= 2 lane-dense blocks (multiples of 128 rows) so
    #    v7x's two TensorCores both get work; cap at batch_tile to amortize the
    #    ~0.35us/step overhead with fat tiles.
    #  * small B: one 8-row-aligned block, grid=(1,) (all shapes sublane-aligned).
    if B >= 256:
        tb = min(batch_tile, max(128, _round_up(pl.cdiv(B, 2), 128)))
    else:
        tb = _round_up(B, 8)
    grid = (pl.cdiv(B, tb),)

    ma = jnp.asarray(max_action, jnp.float32).reshape((1,))

    resident = lambda a: pl.BlockSpec(a.shape, lambda i: (0, 0))

    flops = 2 * B * (state_dim * h1 + h1 * h2 + h2 * action_dim)
    bytes_accessed = (B * state_dim * x.dtype.itemsize
                      + B * action_dim * 4
                      + W1.size * W1.dtype.itemsize
                      + W2.size * W2.dtype.itemsize
                      + W3.size * W3.dtype.itemsize
                      + (b1.size + b2.size + b3.size) * 4)
    cost = pl.CostEstimate(flops=flops,
                           transcendentals=B * action_dim,
                           bytes_accessed=bytes_accessed)

    out = pl.pallas_call(
        _actor_kernel,
        out_shape=jax.ShapeDtypeStruct((B, action_dim), jnp.float32),
        grid=grid,
        in_specs=[
            pl.BlockSpec((tb, state_dim), lambda i: (i, 0)),     # streamed state
            resident(W1), resident(b1),
            resident(W2), resident(b2),
            resident(W3), resident(b3),
            pl.BlockSpec(memory_space=pltpu.MemorySpace.SMEM),   # max_action
        ],
        out_specs=pl.BlockSpec((tb, action_dim), lambda i: (i, 0)),
        compiler_params=pltpu.CompilerParams(
            dimension_semantics=("parallel",)),
        cost_estimate=cost,
    )(x, W1, b1, W2, b2, W3, b3, ma)

    return out


@partial(jax.jit, static_argnames=("batch_tile", "stream_dtype"))
def actor_forward(state, params, max_action, *, batch_tile=4096,
                  stream_dtype=None):
    """state: (B, state_dim) float32.

    params: PyTorch-native layouts:
        W1 (h1, state_dim), b1 (h1, 1), W2 (h2, h1), b2 (h2, 1),
        W3 (action_dim, h2), b3 (action_dim, 1).
    Returns (B, action_dim) float32 actions = max_action * tanh(MLP(state)).
    """
    return _actor_forward_impl(state, params, max_action, batch_tile,
                               stream_dtype)


def init_params(key, state_dim, action_dim, hidden_sizes=(64, 64)):
    """Deterministic synthetic init (stand-in for init_()); weights stored in
    PyTorch-native (out_features, in_features) layout, biases as (out, 1)."""
    h1, h2 = hidden_sizes
    k1, k2, k3 = jax.random.split(key, 3)

    def lin(k, fan_in, fan_out):
        scale = 1.0 / jnp.sqrt(jnp.float32(fan_in))
        w = jax.random.uniform(k, (fan_out, fan_in), jnp.float32, -scale, scale)
        b = jnp.zeros((fan_out, 1), jnp.float32)
        return w, b

    W1, b1 = lin(k1, state_dim, h1)
    W2, b2 = lin(k2, h1, h2)
    W3, b3 = lin(k3, h2, action_dim)
    return dict(W1=W1, b1=b1, W2=W2, b2=b2, W3=W3, b3=b3)


def ref_forward(state, params, max_action):
    h = jnp.maximum(state @ params["W1"].T + params["b1"].T, 0.0)
    h = jnp.maximum(h @ params["W2"].T + params["b2"].T, 0.0)
    return max_action * jnp.tanh(h @ params["W3"].T + params["b3"].T)


if __name__ == "__main__":
    key = jax.random.PRNGKey(0)
    state_dim, action_dim = 16, 8
    max_action = 2.0

    pkey, k_small, k_big = jax.random.split(key, 3)
    params = init_params(pkey, state_dim, action_dim, hidden_sizes=(64, 64))

    # Small-batch path (grid=(1,), 8-row aligned block, f32).
    state = jax.random.normal(k_small, (2, state_dim), jnp.float32)
    out = jax.block_until_ready(actor_forward(state, params, max_action))
    ref = ref_forward(state, params, max_action)
    assert out.shape == (2, action_dim)
    assert jnp.allclose(out, ref, atol=1e-4, rtol=1e-4)

    # Tiled path: non-divisible batch (partial final block) and >= 2 grid
    # steps (exercises the v7x two-core split), f32.
    B_big = 1500
    state_big = jax.random.normal(k_big, (B_big, state_dim), jnp.float32)
    out_big = jax.block_until_ready(
        actor_forward(state_big, params, max_action, batch_tile=512))
    ref_big = ref_forward(state_big, params, max_action)
    assert out_big.shape == (B_big, action_dim)
    assert jnp.allclose(out_big, ref_big, atol=1e-4, rtol=1e-4)

    # bf16-streamed variant (state + weights feed the MXU in bf16, f32 accum).
    out_bf16 = jax.block_until_ready(
        actor_forward(state_big, params, max_action, batch_tile=1024,
                      stream_dtype=jnp.bfloat16))
    assert jnp.allclose(out_bf16, ref_big, atol=2e-2, rtol=2e-2)

    print("KERNEL_OK")
</pallas_src>

<mosaic_0001>
module attributes {stable_mosaic.version = 11 : i64} {
  func.func @_actor_kernel(%arg0: i32, %arg1: memref<8x16xf32, #tpu.memory_space<vmem>>, %arg2: memref<64x16xf32, #tpu.memory_space<vmem>>, %arg3: memref<64x1xf32, #tpu.memory_space<vmem>>, %arg4: memref<64x64xf32, #tpu.memory_space<vmem>>, %arg5: memref<64x1xf32, #tpu.memory_space<vmem>>, %arg6: memref<8x64xf32, #tpu.memory_space<vmem>>, %arg7: memref<8x1xf32, #tpu.memory_space<vmem>>, %arg8: memref<1xf32, #tpu.memory_space<smem>>, %arg9: memref<8x8xf32, #tpu.memory_space<vmem>>) attributes {dimension_semantics = [#tpu.dimension_semantics<parallel>], iteration_bounds = array<i64: 1>, scalar_prefetch = 0 : i64, scratch_operands = 0 : i64, tpu.core_type = #tpu.core_type<tc>, window_params = [{transform_indices = @transform_0, window_bounds = array<i64: 8, 16>}, {pipeline_mode = #tpu.pipeline_mode<synchronous>, transform_indices = @transform_1, window_bounds = array<i64: 64, 16>}, {pipeline_mode = #tpu.pipeline_mode<synchronous>, transform_indices = @transform_2, window_bounds = array<i64: 64, 1>}, {pipeline_mode = #tpu.pipeline_mode<synchronous>, transform_indices = @transform_3, window_bounds = array<i64: 64, 64>}, {pipeline_mode = #tpu.pipeline_mode<synchronous>, transform_indices = @transform_4, window_bounds = array<i64: 64, 1>}, {pipeline_mode = #tpu.pipeline_mode<synchronous>, transform_indices = @transform_5, window_bounds = array<i64: 8, 64>}, {pipeline_mode = #tpu.pipeline_mode<synchronous>, transform_indices = @transform_6, window_bounds = array<i64: 8, 1>}, {transform_indices = @transform_7, window_bounds = array<i64: 1>}, {transform_indices = @transform_8, window_bounds = array<i64: 8, 8>}]} {
    %c0 = arith.constant 0 : index
    %c0_0 = arith.constant 0 : index
    %0 = vector.load %arg1[%c0, %c0_0] : memref<8x16xf32, #tpu.memory_space<vmem>>, vector<8x16xf32>
    %c0_1 = arith.constant 0 : index
    %c0_2 = arith.constant 0 : index
    %1 = vector.load %arg2[%c0_1, %c0_2] : memref<64x16xf32, #tpu.memory_space<vmem>>, vector<64x16xf32>
    %cst = arith.constant dense<0.000000e+00> : vector<64x8xf32>
    %2 = tpu.matmul %1, %0, %cst {dimension_numbers = #tpu.dot_dimension_numbers<[1], [1], [0], [0], [0, 0, 1, 0], [], []>} : vector<64x16xf32>, vector<8x16xf32>, vector<64x8xf32> -> vector<64x8xf32>
    %c0_3 = arith.constant 0 : index
    %c0_4 = arith.constant 0 : index
    %3 = vector.load %arg3[%c0_3, %c0_4] : memref<64x1xf32, #tpu.memory_space<vmem>>, vector<64x1xf32>
    %4 = vector.broadcast %3 : vector<64x1xf32> to vector<64x8xf32>
    %5 = arith.addf %2, %4 : vector<64x8xf32>
    %cst_5 = arith.constant 0.000000e+00 : f32
    %6 = vector.broadcast %cst_5 : f32 to vector<64x8xf32>
    %7 = arith.maximumf %5, %6 : vector<64x8xf32>
    %c0_6 = arith.constant 0 : index
    %c0_7 = arith.constant 0 : index
    %8 = vector.load %arg4[%c0_6, %c0_7] : memref<64x64xf32, #tpu.memory_space<vmem>>, vector<64x64xf32>
    %cst_8 = arith.constant dense<0.000000e+00> : vector<64x8xf32>
    %9 = tpu.matmul %8, %7, %cst_8 {dimension_numbers = #tpu.dot_dimension_numbers<[1], [0], [0], [1], [0, 0, 1, 1], [], []>} : vector<64x64xf32>, vector<64x8xf32>, vector<64x8xf32> -> vector<64x8xf32>
    %c0_9 = arith.constant 0 : index
    %c0_10 = arith.constant 0 : index
    %10 = vector.load %arg5[%c0_9, %c0_10] : memref<64x1xf32, #tpu.memory_space<vmem>>, vector<64x1xf32>
    %11 = vector.broadcast %10 : vector<64x1xf32> to vector<64x8xf32>
    %12 = arith.addf %9, %11 : vector<64x8xf32>
    %cst_11 = arith.constant 0.000000e+00 : f32
    %13 = vector.broadcast %cst_11 : f32 to vector<64x8xf32>
    %14 = arith.maximumf %12, %13 : vector<64x8xf32>
    %c0_12 = arith.constant 0 : index
    %c0_13 = arith.constant 0 : index
    %15 = vector.load %arg6[%c0_12, %c0_13] : memref<8x64xf32, #tpu.memory_space<vmem>>, vector<8x64xf32>
    %cst_14 = arith.constant dense<0.000000e+00> : vector<8x8xf32>
    %16 = tpu.matmul %15, %14, %cst_14 {dimension_numbers = #tpu.dot_dimension_numbers<[1], [0], [0], [1], [0, 0, 1, 1], [], []>} : vector<8x64xf32>, vector<64x8xf32>, vector<8x8xf32> -> vector<8x8xf32>
    %c0_15 = arith.constant 0 : index
    %c0_16 = arith.constant 0 : index
    %17 = vector.load %arg7[%c0_15, %c0_16] : memref<8x1xf32, #tpu.memory_space<vmem>>, vector<8x1xf32>
    %18 = vector.broadcast %17 : vector<8x1xf32> to vector<8x8xf32>
    %19 = arith.addf %16, %18 : vector<8x8xf32>
    %20 = math.tanh %19 : vector<8x8xf32>
    %c0_17 = arith.constant 0 : index
    %21 = memref.load %arg8[%c0_17] : memref<1xf32, #tpu.memory_space<smem>>
    %22 = vector.broadcast %21 : f32 to vector<8x8xf32>
    %23 = arith.mulf %20, %22 : vector<8x8xf32>
    %24 = tpu.transpose %23, [1, 0] : vector<8x8xf32> -> vector<8x8xf32>
    %c0_18 = arith.constant 0 : index
    %c0_19 = arith.constant 0 : index
    %25 = vector.load %arg9[%c0_18, %c0_19] : memref<8x8xf32, #tpu.memory_space<vmem>>, vector<8x8xf32>
    tpu.vector_store %arg9[%c0_18, %c0_19], %24 {strides = array<i32>} : memref<8x8xf32, #tpu.memory_space<vmem>>, vector<8x8xf32>,
    return
  }
  func.func @transform_0(%arg0: i32) -> (i32, i32) {
    %c0_i32 = arith.constant 0 : i32
    %c0_i32_0 = arith.constant 0 : i32
    return %arg0, %c0_i32 : i32, i32
  }
  func.func @transform_1(%arg0: i32) -> (i32, i32) {
    %c0_i32 = arith.constant 0 : i32
    %c0_i32_0 = arith.constant 0 : i32
    %c0_i32_1 = arith.constant 0 : i32
    return %c0_i32, %c0_i32_0 : i32, i32
  }
  func.func @transform_2(%arg0: i32) -> (i32, i32) {
    %c0_i32 = arith.constant 0 : i32
    %c0_i32_0 = arith.constant 0 : i32
    %c0_i32_1 = arith.constant 0 : i32
    return %c0_i32, %c0_i32_0 : i32, i32
  }
  func.func @transform_3(%arg0: i32) -> (i32, i32) {
    %c0_i32 = arith.constant 0 : i32
    %c0_i32_0 = arith.constant 0 : i32
    %c0_i32_1 = arith.constant 0 : i32
    return %c0_i32, %c0_i32_0 : i32, i32
  }
  func.func @transform_4(%arg0: i32) -> (i32, i32) {
    %c0_i32 = arith.constant 0 : i32
    %c0_i32_0 = arith.constant 0 : i32
    %c0_i32_1 = arith.constant 0 : i32
    return %c0_i32, %c0_i32_0 : i32, i32
  }
  func.func @transform_5(%arg0: i32) -> (i32, i32) {
    %c0_i32 = arith.constant 0 : i32
    %c0_i32_0 = arith.constant 0 : i32
    %c0_i32_1 = arith.constant 0 : i32
    return %c0_i32, %c0_i32_0 : i32, i32
  }
  func.func @transform_6(%arg0: i32) -> (i32, i32) {
    %c0_i32 = arith.constant 0 : i32
    %c0_i32_0 = arith.constant 0 : i32
    %c0_i32_1 = arith.constant 0 : i32
    return %c0_i32, %c0_i32_0 : i32, i32
  }
  func.func @transform_7(%arg0: i32) -> i32 {
    %c0_i32 = arith.constant 0 : i32
    %c0_i32_0 = arith.constant 0 : i32
    return %c0_i32 : i32
  }
  func.func @transform_8(%arg0: i32) -> (i32, i32) {
    %c0_i32 = arith.constant 0 : i32
    %c0_i32_0 = arith.constant 0 : i32
    return %arg0, %c0_i32 : i32, i32
  }
}

</mosaic_0001>

<llo_original>
// kernel: actor_forward.1
$region0: #{actor_forward.1}
  #allocation0 [shape = 'u32[]', space=smem, size = 0x4, offset = 0x4, fixed_abs, tag = 'smem constant byte address 0x4 - core index']
  #allocation1 [shape = 'u32[72,128]{1,0:T(1,128)}', space=vmem, size = 0x9000, scoped, tag = 'internal scratch']
  #allocation2 [shape = 'f32[1]{0:T(128)S(6)}', space=smem, size = 0x200, scoped, tag = 'scoped memory for actor_forward.1']
  %s0 = inlined_call_operand.vmem [shape: f32[2,16], index: 0, kind: input, shape index: {}]
  %s1 = inlined_call_operand.vmem [shape: f32[64,16], index: 1, kind: input, shape index: {}]
  %s2 = inlined_call_operand.vmem [shape: f32[64,1], index: 2, kind: input, shape index: {}]
  %s3 = inlined_call_operand.vmem [shape: f32[64,64], index: 3, kind: input, shape index: {}]
  %s4 = inlined_call_operand.vmem [shape: f32[64,1], index: 4, kind: input, shape index: {}]
  %s5 = inlined_call_operand.vmem [shape: f32[8,64], index: 5, kind: input, shape index: {}]
  %s6 = inlined_call_operand.vmem [shape: f32[8,1], index: 6, kind: input, shape index: {}]
  %s7 = inlined_call_operand.<no memory space> [shape: f32[1], index: 7, kind: input, shape index: {}]
  %s8 = inlined_call_operand.hbm [shape: f32[2,8], index: 8, kind: output, shape index: {}]
  %s9 = sld [smem:[#allocation0]]
  $region42: #{actor_forward.1} parent=0
    _
  %s11 = ssub.s32 1, %s9
  %s12 = scalar_select 0, %s11, %s9
  %13 = sst [smem:[#allocation2]] %s7
  $region1: #{actor_forward.1} parent=0
    #allocation3 [shape = 'u8[4096]{0}', space=vmem, size = 0x1000, scoped, tag = 'output window, operand 0, single buffered']
    #allocation4 [shape = 's32[1]{0}', space=sflag, size = 0x4, scoped, tag = 'scoped memory for actor_forward.1']
    %14 = vsyncpa [#allocation4], 0
    // Predicated region
    $region2: #{actor_forward.1} parent=1 // pred_check
      _
    $region3: #{actor_forward.1} parent=1 // pred_check_branch
      %16 = sbr.rel (0) target = $region5
    $region4: #{actor_forward.1} parent=1 // pred_region
      _
    $region5: #{actor_forward.1} parent=1 // pred_fallthru
      _
    // Predicated region
    $region6: #{actor_forward.1} parent=1 // pred_check
      _
    $region7: #{actor_forward.1} parent=1 // pred_check_branch
      %18 = sbr.rel (0) target = $region9
    $region8: #{actor_forward.1} parent=1 // pred_region
      _
    $region9: #{actor_forward.1} parent=1 // pred_fallthru
      _
    // Predicated region
    $region10: #{actor_forward.1} parent=1 // pred_check
      _
    $region11: #{actor_forward.1} parent=1 // pred_check_branch
      %20 = sbr.rel (0) target = $region13
    $region12: #{actor_forward.1} parent=1 // pred_region
      _
    $region13: #{actor_forward.1} parent=1 // pred_fallthru
      _
    // Predicated region
    $region14: #{actor_forward.1} parent=1 // pred_check
      _
    $region15: #{actor_forward.1} parent=1 // pred_check_branch
      %22 = sbr.rel (0) target = $region17
    $region16: #{actor_forward.1} parent=1 // pred_region
      _
    $region17: #{actor_forward.1} parent=1 // pred_fallthru
      _
    // Predicated region
    $region18: #{actor_forward.1} parent=1 // pred_check
      _
    $region19: #{actor_forward.1} parent=1 // pred_check_branch
      %24 = sbr.rel (0) target = $region21
    $region20: #{actor_forward.1} parent=1 // pred_region
      _
    $region21: #{actor_forward.1} parent=1 // pred_fallthru
      _
    // Predicated region
    $region22: #{actor_forward.1} parent=1 // pred_check
      _
    $region23: #{actor_forward.1} parent=1 // pred_check_branch
      %26 = sbr.rel (0) target = $region25
    $region24: #{actor_forward.1} parent=1 // pred_region
      _
    $region25: #{actor_forward.1} parent=1 // pred_fallthru
      _
    // Predicated region
    $region26: #{actor_forward.1} parent=1 // pred_check
      _
    $region27: #{actor_forward.1} parent=1 // pred_check_branch
      %28 = sbr.rel (0) target = $region29
    $region28: #{actor_forward.1} parent=1 // pred_region
      _
    $region29: #{actor_forward.1} parent=1 // pred_fallthru
      _
    // Predicated region
    $region30: #{actor_forward.1} parent=1 // pred_check
      _
    $region31: #{actor_forward.1} parent=1 // pred_check_branch
      %30 = sbr.rel (0) target = $region33
    $region32: #{actor_forward.1} parent=1 // pred_region
      _
    $region33: #{actor_forward.1} parent=1 // pred_fallthru
      _
    %v31 = vld [vmem:[%s0] sm:$0xff]
    %v32 = vld [vmem:[%s1] sm:$0xff]
    %v33 = vld [vmem:[%s1 + $0x8] sm:$0xff]
    %v34 = vld [vmem:[%s1 + $0x10] sm:$0xff]
    %v35 = vld [vmem:[%s1 + $0x18] sm:$0xff]
    %v36 = vld [vmem:[%s1 + $0x20] sm:$0xff]
    %v37 = vld [vmem:[%s1 + $0x28] sm:$0xff]
    %v38 = vld [vmem:[%s1 + $0x30] sm:$0xff]
    %v39 = vld [vmem:[%s1 + $0x38] sm:$0xff]
    %v40 = vld [vmem:[%s2] sm:$0xff]
    %v41 = vld [vmem:[%s2 + $0x8] sm:$0xff]
    %v42 = vld [vmem:[%s2 + $0x10] sm:$0xff]
    %v43 = vld [vmem:[%s2 + $0x18] sm:$0xff]
    %v44 = vld [vmem:[%s2 + $0x20] sm:$0xff]
    %v45 = vld [vmem:[%s2 + $0x28] sm:$0xff]
    %v46 = vld [vmem:[%s2 + $0x30] sm:$0xff]
    %v47 = vld [vmem:[%s2 + $0x38] sm:$0xff]
    %49 = vset.pattern.permute.xlu0 0
    %50 = vperm.xlu0 %49, %v40
    %v51 = vpop.permute.xlu0 %50
    %54 = vset.pattern.permute.xlu0 0
    %55 = vperm.xlu0 %54, %v41
    %v56 = vpop.permute.xlu0 %55
    %59 = vset.pattern.permute.xlu0 0
    %60 = vperm.xlu0 %59, %v42
    %v61 = vpop.permute.xlu0 %60
    %64 = vset.pattern.permute.xlu0 0
    %65 = vperm.xlu0 %64, %v43
    %v66 = vpop.permute.xlu0 %65
    %69 = vset.pattern.permute.xlu0 0
    %70 = vperm.xlu0 %69, %v44
    %v71 = vpop.permute.xlu0 %70
    %74 = vset.pattern.permute.xlu0 0
    %75 = vperm.xlu0 %74, %v45
    %v76 = vpop.permute.xlu0 %75
    %79 = vset.pattern.permute.xlu0 0
    %80 = vperm.xlu0 %79, %v46
    %v81 = vpop.permute.xlu0 %80
    %84 = vset.pattern.permute.xlu0 0
    %85 = vperm.xlu0 %84, %v47
    %v86 = vpop.permute.xlu0 %85
    %vm88 = vcmask 130048
    %v90 = vsel %vm88, %v32, 0
    %v93 = vsel %vm88, %v33, 0
    %v96 = vsel %vm88, %v34, 0
    %v99 = vsel %vm88, %v35, 0
    %v102 = vsel %vm88, %v36, 0
    %v105 = vsel %vm88, %v37, 0
    %v108 = vsel %vm88, %v38, 0
    %v111 = vsel %vm88, %v39, 0
    %v114 = vsel %vm88, %v31, 0
    %116 = vmatpush.xpose.msra.mxu0 0.0
    %117 = vmatpush.xpose.msra.mxu0 0.0
    %118 = vmatpush.xpose.msra.mxu0 0.0
    %119 = vmatpush.xpose.msra.mxu0 0.0
    %120 = vmatpush.xpose.msra.mxu0 0.0
    %121 = vmatpush.xpose.msra.mxu0 0.0
    %122 = vmatpush.xpose.msra.mxu0 0.0
    %123 = vmatpush.xpose.msra.mxu0 0.0
    %124 = vmatpush.xpose.msra.mxu0 0.0
    %125 = vmatpush.xpose.msra.mxu0 0.0
    %126 = vmatpush.xpose.msra.mxu0 0.0
    %127 = vmatpush.xpose.msra.mxu0 0.0
    %128 = vmatpush.xpose.msra.mxu0 0.0
    %129 = vmatpush.xpose.msra.mxu0 0.0
    %130 = vmatpush.xpose.msra.mxu0 0.0
    %131 = vmatpush.xpose.msra.mxu0 %v114
    %132 = vmatmul.f32.gmra.mxu0 %v90
    %v133 = vpop.f32.mrf.mxu0
    %v134 = vadd.f32 %v51, %v133
    %135 = vmatmul.f32.gmra.mxu0 %v93
    %v136 = vpop.f32.mrf.mxu0
    %v137 = vadd.f32 %v56, %v136
    %138 = vmatmul.f32.gmra.mxu0 %v96
    %v139 = vpop.f32.mrf.mxu0
    %v140 = vadd.f32 %v61, %v139
    %141 = vmatmul.f32.gmra.mxu0 %v99
    %v142 = vpop.f32.mrf.mxu0
    %v143 = vadd.f32 %v66, %v142
    %144 = vmatmul.f32.gmra.mxu0 %v102
    %v145 = vpop.f32.mrf.mxu0
    %v146 = vadd.f32 %v71, %v145
    %147 = vmatmul.f32.gmra.mxu0 %v105
    %v148 = vpop.f32.mrf.mxu0
    %v149 = vadd.f32 %v76, %v148
    %150 = vmatmul.f32.gmra.mxu0 %v108
    %v151 = vpop.f32.mrf.mxu0
    %v152 = vadd.f32 %v81, %v151
    %153 = vmatmul.f32.gmra.mxu0 %v111
    %v154 = vpop.f32.mrf.mxu0
    %v155 = vadd.f32 %v86, %v154
    %156 = vdwg.mxu0
    %v157 = vmax.f32 %v134, 0.0
    %v158 = vmax.f32 %v137, 0.0
    %v159 = vmax.f32 %v140, 0.0
    %v160 = vmax.f32 %v143, 0.0
    %v161 = vmax.f32 %v146, 0.0
    %v162 = vmax.f32 %v149, 0.0
    %v163 = vmax.f32 %v152, 0.0
    %v164 = vmax.f32 %v155, 0.0
    %v165 = vld [vmem:[%s3] sm:$0xff]
    %v166 = vld [vmem:[%s3 + $0x8] sm:$0xff]
    %v167 = vld [vmem:[%s3 + $0x10] sm:$0xff]
    %v168 = vld [vmem:[%s3 + $0x18] sm:$0xff]
    %v169 = vld [vmem:[%s3 + $0x20] sm:$0xff]
    %v170 = vld [vmem:[%s3 + $0x28] sm:$0xff]
    %v171 = vld [vmem:[%s3 + $0x30] sm:$0xff]
    %v172 = vld [vmem:[%s3 + $0x38] sm:$0xff]
    %v173 = vld [vmem:[%s4] sm:$0xff]
    %v174 = vld [vmem:[%s4 + $0x8] sm:$0xff]
    %v175 = vld [vmem:[%s4 + $0x10] sm:$0xff]
    %v176 = vld [vmem:[%s4 + $0x18] sm:$0xff]
    %v177 = vld [vmem:[%s4 + $0x20] sm:$0xff]
    %v178 = vld [vmem:[%s4 + $0x28] sm:$0xff]
    %v179 = vld [vmem:[%s4 + $0x30] sm:$0xff]
    %v180 = vld [vmem:[%s4 + $0x38] sm:$0xff]
    %182 = vset.pattern.permute.xlu0 0
    %183 = vperm.xlu0 %182, %v173
    %v184 = vpop.permute.xlu0 %183
    %187 = vset.pattern.permute.xlu0 0
    %188 = vperm.xlu0 %187, %v174
    %v189 = vpop.permute.xlu0 %188
    %192 = vset.pattern.permute.xlu0 0
    %193 = vperm.xlu0 %192, %v175
    %v194 = vpop.permute.xlu0 %193
    %197 = vset.pattern.permute.xlu0 0
    %198 = vperm.xlu0 %197, %v176
    %v199 = vpop.permute.xlu0 %198
    %202 = vset.pattern.permute.xlu0 0
    %203 = vperm.xlu0 %202, %v177
    %v204 = vpop.permute.xlu0 %203
    %207 = vset.pattern.permute.xlu0 0
    %208 = vperm.xlu0 %207, %v178
    %v209 = vpop.permute.xlu0 %208
    %212 = vset.pattern.permute.xlu0 0
    %213 = vperm.xlu0 %212, %v179
    %v214 = vpop.permute.xlu0 %213
    %217 = vset.pattern.permute.xlu0 0
    %218 = vperm.xlu0 %217, %v180
    %v219 = vpop.permute.xlu0 %218
    %vm221 = vcmask 523264
    %v223 = vsel %vm221, %v165, 0
    %v226 = vsel %vm221, %v166, 0
    %v229 = vsel %vm221, %v167, 0
    %v232 = vsel %vm221, %v168, 0
    %v235 = vsel %vm221, %v169, 0
    %v238 = vsel %vm221, %v170, 0
    %v241 = vsel %vm221, %v171, 0
    %v244 = vsel %vm221, %v172, 0
    %246 = vmatpush.msra.mxu0 0.0
    %247 = vmatpush.msra.mxu0 0.0
    %248 = vmatpush.msra.mxu0 0.0
    %249 = vmatpush.msra.mxu0 0.0
    %250 = vmatpush.msra.mxu0 0.0
    %251 = vmatpush.msra.mxu0 0.0
    %252 = vmatpush.msra.mxu0 0.0
    %253 = vmatpush.msra.mxu0 0.0
    %254 = vmatpush.msra.mxu0 %v164
    %255 = vmatpush.msra.mxu0 %v163
    %256 = vmatpush.msra.mxu0 %v162
    %257 = vmatpush.msra.mxu0 %v161
    %258 = vmatpush.msra.mxu0 %v160
    %259 = vmatpush.msra.mxu0 %v159
    %260 = vmatpush.msra.mxu0 %v158
    %261 = vmatpush.msra.mxu0 %v157
    %262 = vmatmul.f32.gmra.mxu0 %v223
    %v263 = vpop.f32.mrf.mxu0
    %v264 = vadd.f32 %v184, %v263
    %265 = vmatmul.f32.gmra.mxu0 %v226
    %v266 = vpop.f32.mrf.mxu0
    %v267 = vadd.f32 %v189, %v266
    %268 = vmatmul.f32.gmra.mxu0 %v229
    %v269 = vpop.f32.mrf.mxu0
    %v270 = vadd.f32 %v194, %v269
    %271 = vmatmul.f32.gmra.mxu0 %v232
    %v272 = vpop.f32.mrf.mxu0
    %v273 = vadd.f32 %v199, %v272
    %274 = vmatmul.f32.gmra.mxu0 %v235
    %v275 = vpop.f32.mrf.mxu0
    %v276 = vadd.f32 %v204, %v275
    %277 = vmatmul.f32.gmra.mxu0 %v238
    %v278 = vpop.f32.mrf.mxu0
    %v279 = vadd.f32 %v209, %v278
    %280 = vmatmul.f32.gmra.mxu0 %v241
    %v281 = vpop.f32.mrf.mxu0
    %v282 = vadd.f32 %v214, %v281
    %283 = vmatmul.f32.gmra.mxu0 %v244
    %v284 = vpop.f32.mrf.mxu0
    %v285 = vadd.f32 %v219, %v284
    %286 = vdwg.mxu0
    %v287 = vmax.f32 %v264, 0.0
    %v288 = vmax.f32 %v267, 0.0
    %v289 = vmax.f32 %v270, 0.0
    %v290 = vmax.f32 %v273, 0.0
    %v291 = vmax.f32 %v276, 0.0
    %v292 = vmax.f32 %v279, 0.0
    %v293 = vmax.f32 %v282, 0.0
    %v294 = vmax.f32 %v285, 0.0
    %v295 = vld [vmem:[%s5] sm:$0xff]
    %v296 = vld [vmem:[%s6] sm:$0xff]
    %298 = vset.pattern.permute.xlu0 0
    %299 = vperm.xlu0 %298, %v296
    %v300 = vpop.permute.xlu0 %299
    %v303 = vsel %vm221, %v295, 0
    %305 = vmatpush.msra.mxu0 0.0
    %306 = vmatpush.msra.mxu0 0.0
    %307 = vmatpush.msra.mxu0 0.0
    %308 = vmatpush.msra.mxu0 0.0
    %309 = vmatpush.msra.mxu0 0.0
    %310 = vmatpush.msra.mxu0 0.0
    %311 = vmatpush.msra.mxu0 0.0
    %312 = vmatpush.msra.mxu0 0.0
    %313 = vmatpush.msra.mxu0 %v294
    %314 = vmatpush.msra.mxu0 %v293
    %315 = vmatpush.msra.mxu0 %v292
    %316 = vmatpush.msra.mxu0 %v291
    %317 = vmatpush.msra.mxu0 %v290
    %318 = vmatpush.msra.mxu0 %v289
    %319 = vmatpush.msra.mxu0 %v288
    %320 = vmatpush.msra.mxu0 %v287
    %321 = vmatmul.f32.gmra.mxu0 %v303
    %v322 = vpop.f32.mrf.mxu0
    %v323 = vadd.f32 %v300, %v322
    %324 = vdwg.mxu0
    %v325 = vtanh.pop %v323
    %s326 = sld [smem:[#allocation2]]
    %v327 = vstv %s326
    %v328 = vmul.f32 %v325, %v327
    %329 = vxpose.xlu0.b32.start [1/16] %v328, 128
    %330 = vxpose.xlu0.b32.cont [2/16] 0.0, 128
    %331 = vxpose.xlu0.b32.cont [3/16] 0.0, 128
    %332 = vxpose.xlu0.b32.cont [4/16] 0.0, 128
    %333 = vxpose.xlu0.b32.cont [5/16] 0.0, 128
    %334 = vxpose.xlu0.b32.cont [6/16] 0.0, 128
    %335 = vxpose.xlu0.b32.cont [7/16] 0.0, 128
    %336 = vxpose.xlu0.b32.cont [8/16] 0.0, 128
    %337 = vxpose.xlu0.b32.cont [9/16] 0.0, 128
    %338 = vxpose.xlu0.b32.cont [10/16] 0.0, 128
    %339 = vxpose.xlu0.b32.cont [11/16] 0.0, 128
    %340 = vxpose.xlu0.b32.cont [12/16] 0.0, 128
    %341 = vxpose.xlu0.b32.cont [13/16] 0.0, 128
    %342 = vxpose.xlu0.b32.cont [14/16] 0.0, 128
    %343 = vxpose.xlu0.b32.cont [15/16] 0.0, 128
    %344 = vxpose.xlu0.b32.end [16/16] 0.0, 128
    %v345 = vpop.trf.xlu0
    %v346 = vpop.trf.xlu0
    %v347 = vpop.trf.xlu0
    %v348 = vpop.trf.xlu0
    %v349 = vpop.trf.xlu0
    %v350 = vpop.trf.xlu0
    %v351 = vpop.trf.xlu0
    %v352 = vpop.trf.xlu0
    %v353 = vpop.trf.xlu0
    %v354 = vpop.trf.xlu0
    %v355 = vpop.trf.xlu0
    %v356 = vpop.trf.xlu0
    %v357 = vpop.trf.xlu0
    %v358 = vpop.trf.xlu0
    %v359 = vpop.trf.xlu0
    %v360 = vpop.trf.xlu0
    %vm361 = vcmask 64512
    %362 = vst.msk [vmem:[#allocation3] sm:$0xff] %vm361, %v345
    // Predicated region
    $region34: #{actor_forward.1} parent=1 // pred_check
      _
    $region35: #{actor_forward.1} parent=1 // pred_check_branch
      %364 = sbr.rel (0) target = $region37
    $region36: #{actor_forward.1} parent=1 // pred_region
      %366 = vsyncadd [#allocation4], 96
      %s367 = sshll.u32 [#allocation3], 4
      %s368 = int_to_ptr.vmem [resolvable:$true] %s367
      %s369 = sshll.u32 %s8, 4
      %s370 = int_to_ptr.hbm [resolvable:$true] %s369
      %375 = dma.vmem_to_hbm [thread:$0]  %s368, 32, %s370, [#allocation4], 32, 32, 2
    $region37: #{actor_forward.1} parent=1 // pred_fallthru
      _
    // Predicated region
    $region38: #{actor_forward.1} parent=1 // pred_check
      _
    $region39: #{actor_forward.1} parent=1 // pred_check_branch
      %377 = sbr.rel (0) target = $region41
    $region40: #{actor_forward.1} parent=1 // pred_region
      %379 = dma.done [#allocation4], 128
    $region41: #{actor_forward.1} parent=1 // pred_fallthru
      _
    %380 = vsyncpa [#allocation4], 1

</llo_original>
